<compile_context>
chip_gen: v5e
topology: v5e:2x2
jax: 0.10.0
libtpu: 0.0.40
codegen_flags: <defaults>
</compile_context>

<pallas_src>
import functools

import jax
import jax.numpy as jnp
from jax.experimental import pallas as pl
from jax.experimental.pallas import tpu as pltpu


def _round_up(x, m):
    return (x + m - 1) // m * m


# ----------------------------- Pallas kernels ------------------------------

def _edge_inner_product_kernel(idx_ref, zt_ref, adj_ref, *, apply_sigmoid):
    """One tile of TE edges.

    idx_ref : (2, TE)  int32   src/dst node ids for this edge tile
    zt_ref  : (D, N_pad)       z transposed, resident in VMEM across the grid
    adj_ref : (1, TE)  float32 lane-dense output tile
    """
    n_pad = zt_ref.shape[1]
    te = idx_ref.shape[1]

    # Load once; cast to f32 so bf16 storage still computes in f32 (v5e-safe).
    zt = zt_ref[...].astype(jnp.float32)                       # (D, N_pad)
    idx = idx_ref[...]                                         # (2, TE)

    # One-hot gather matrices, built fully vectorized (edges on lanes).
    node_iota = jax.lax.broadcasted_iota(jnp.int32, (n_pad, te), 0)
    onehot_src = jnp.where(node_iota == idx[0:1, :], 1.0, 0.0).astype(jnp.float32)
    onehot_dst = jnp.where(node_iota == idx[1:2, :], 1.0, 0.0).astype(jnp.float32)

    # MXU gathers: zsrc[d, e] = z[src[e], d] ; zdst[d, e] = z[dst[e], d]
    zsrc = jnp.dot(zt, onehot_src, preferred_element_type=jnp.float32)  # (D, TE)
    zdst = jnp.dot(zt, onehot_dst, preferred_element_type=jnp.float32)  # (D, TE)

    # Per-edge inner product: reduce over D (sublane reduce, stays lane-dense).
    val = jnp.sum(zsrc * zdst, axis=0, keepdims=True)          # (1, TE)
    if apply_sigmoid:
        val = jax.nn.sigmoid(val)                              # EUP
    adj_ref[...] = val.astype(adj_ref.dtype)


def _linear_kernel(z_ref, w_ref, b_ref, out_ref):
    """One row tile of the fc layer.

    z_ref : (TN, D), w_ref : (D, C_pad) resident, b_ref : (1, C_pad) resident,
    out_ref : (TN, C_pad) lane-dense (C padded to a multiple of 128).
    """
    acc = jnp.dot(z_ref[...], w_ref[...], preferred_element_type=jnp.float32)
    out_ref[...] = (acc + b_ref[...]).astype(out_ref.dtype)


# ------------------------------ Host wrappers -------------------------------

def edge_inner_product(z, edge_index, *, sigmoid=True,
                       compute_dtype=jnp.float32, tile_edges=4096):
    """adj_recon[e] = (sigmoid of) <z[edge_index[0, e]], z[edge_index[1, e]]>."""
    N, D = z.shape
    E = edge_index.shape[1]
    N_pad = _round_up(N, 8)

    # Edge tile: multiple of 128 (lane-dense output), capped so the two
    # (N_pad, TE) one-hot gather matrices stay within a few MiB of VMEM.
    onehot_budget_bytes = 4 * 1024 * 1024
    te_cap = max(128, (onehot_budget_bytes // (4 * N_pad)) // 128 * 128)
    TE = min(tile_edges, te_cap, _round_up(E, 128))
    E_pad = _round_up(E, TE)

    # z transposed (edges-on-lanes orientation) and optionally stored in bf16.
    z_t = jnp.transpose(z).astype(compute_dtype)               # (D, N)
    if N_pad != N:
        z_t = jnp.pad(z_t, ((0, 0), (0, N_pad - N)))
    idx = edge_index.astype(jnp.int32)
    if E_pad != E:
        idx = jnp.pad(idx, ((0, 0), (0, E_pad - E)))           # pad edges -> node 0

    kernel = functools.partial(_edge_inner_product_kernel,
                               apply_sigmoid=sigmoid)
    out = pl.pallas_call(
        kernel,
        out_shape=jax.ShapeDtypeStruct((1, E_pad), jnp.float32),
        grid=(E_pad // TE,),
        in_specs=[
            pl.BlockSpec((2, TE), lambda i: (0, i)),        # streamed edge ids
            pl.BlockSpec((D, N_pad), lambda i: (0, 0)),     # z^T resident in VMEM
        ],
        out_specs=pl.BlockSpec((1, TE), lambda i: (0, i)),  # lane-dense output
        compiler_params=pltpu.CompilerParams(
            dimension_semantics=("parallel",)),
    )(idx, z_t)
    # Padded tail slots computed on node 0 are sliced away here.
    return out[0, :E]


def linear(z, w, b, *, tile_rows=512):
    """node_features_recon = z @ w + b   (w: (D, C), b: (1, C))."""
    N, D = z.shape
    C = w.shape[1]
    C_pad = _round_up(C, 128)                 # lane-dense output channels
    N_pad = _round_up(N, 8)
    TN = min(tile_rows, N_pad)
    N_pad = _round_up(N_pad, TN)

    zp = z if N_pad == N else jnp.pad(z, ((0, N_pad - N), (0, 0)))
    wp = w if C_pad == C else jnp.pad(w, ((0, 0), (0, C_pad - C)))
    bp = b if C_pad == C else jnp.pad(b, ((0, 0), (0, C_pad - C)))

    out = pl.pallas_call(
        _linear_kernel,
        out_shape=jax.ShapeDtypeStruct((N_pad, C_pad), jnp.float32),
        grid=(N_pad // TN,),
        in_specs=[
            pl.BlockSpec((TN, D), lambda i: (i, 0)),        # row tile of z
            pl.BlockSpec((D, C_pad), lambda i: (0, 0)),     # W resident
            pl.BlockSpec((1, C_pad), lambda i: (0, 0)),     # b resident
        ],
        out_specs=pl.BlockSpec((TN, C_pad), lambda i: (i, 0)),
        compiler_params=pltpu.CompilerParams(
            dimension_semantics=("parallel",)),
    )(zp, wp, bp)
    return out[:N, :C]


def inner_product_decoder_forward(z, edge_index, params, sigmoid=True,
                                  edge_dtype=jnp.float32):
    """Mirror of InnerProductDecoder.forward.

    z          : (N, D) float32
    edge_index : (2, E) int32
    params     : {'w': (D, C), 'b': (1, C)}   (w is PyTorch weight transposed)
    returns (adj_recon (E,), node_features_recon (N, C))
    """
    adj_recon = edge_inner_product(z, edge_index, sigmoid=sigmoid,
                                   compute_dtype=edge_dtype)
    node_features_recon = linear(z, params["w"], params["b"])
    return adj_recon, node_features_recon


def init_params(key, latent_dim, out_channels):
    """Deterministic Linear(latent_dim, out_channels) init (PyTorch-style uniform)."""
    kw, kb = jax.random.split(key)
    bound = 1.0 / (latent_dim ** 0.5)
    # PyTorch weight is (out_channels, latent_dim); we store its transpose (D, C).
    w = jax.random.uniform(kw, (latent_dim, out_channels),
                           minval=-bound, maxval=bound, dtype=jnp.float32)
    b = jax.random.uniform(kb, (1, out_channels),
                           minval=-bound, maxval=bound, dtype=jnp.float32)
    return {"w": w, "b": b}


# ---------------------------------- Main ------------------------------------

if __name__ == "__main__":
    key = jax.random.PRNGKey(0)
    k_z, k_e, k_p = jax.random.split(key, 3)

    N = 8              # number of nodes
    latent_dim = 32    # D
    out_channels = 16  # C
    E = 16             # number of edges

    z = jax.random.normal(k_z, (N, latent_dim), dtype=jnp.float32)
    edge_index = jax.random.randint(k_e, (2, E), 0, N, dtype=jnp.int32)
    params = init_params(k_p, latent_dim, out_channels)

    fwd = jax.jit(inner_product_decoder_forward,
                  static_argnames=("sigmoid", "edge_dtype"))

    adj_recon, node_features_recon = fwd(z, edge_index, params, sigmoid=True)
    jax.block_until_ready((adj_recon, node_features_recon))

    # Reference check in plain JAX.
    ref_adj = jax.nn.sigmoid(
        jnp.sum(z[edge_index[0]] * z[edge_index[1]], axis=1))
    ref_feat = z @ params["w"] + params["b"]
    assert adj_recon.shape == (E,)
    assert node_features_recon.shape == (N, out_channels)
    assert jnp.allclose(adj_recon, ref_adj, atol=1e-4), "adj mismatch"
    assert jnp.allclose(node_features_recon, ref_feat, atol=1e-4), "feat mismatch"

    # bf16-stored-z edge path (bandwidth optimization); looser tolerance.
    adj_bf16, _ = fwd(z, edge_index, params, sigmoid=True,
                      edge_dtype=jnp.bfloat16)
    jax.block_until_ready(adj_bf16)
    assert jnp.allclose(adj_bf16, ref_adj, atol=3e-2), "bf16 adj mismatch"

    print("KERNEL_OK")
</pallas_src>

<mosaic_0001>
module attributes {stable_mosaic.version = 11 : i64} {
  func.func @_linear_kernel(%arg0: i32, %arg1: memref<8x32xf32, #tpu.memory_space<vmem>>, %arg2: memref<32x128xf32, #tpu.memory_space<vmem>>, %arg3: memref<1x128xf32, #tpu.memory_space<vmem>>, %arg4: memref<8x128xf32, #tpu.memory_space<vmem>>) attributes {dimension_semantics = [#tpu.dimension_semantics<parallel>], iteration_bounds = array<i64: 1>, scalar_prefetch = 0 : i64, scratch_operands = 0 : i64, tpu.core_type = #tpu.core_type<tc>, window_params = [{transform_indices = @transform_0, window_bounds = array<i64: 8, 32>}, {pipeline_mode = #tpu.pipeline_mode<synchronous>, transform_indices = @transform_1, window_bounds = array<i64: 32, 128>}, {pipeline_mode = #tpu.pipeline_mode<synchronous>, transform_indices = @transform_2, window_bounds = array<i64: 1, 128>}, {transform_indices = @transform_3, window_bounds = array<i64: 8, 128>}]} {
    %c0 = arith.constant 0 : index
    %c0_0 = arith.constant 0 : index
    %0 = vector.load %arg1[%c0, %c0_0] : memref<8x32xf32, #tpu.memory_space<vmem>>, vector<8x32xf32>
    %c0_1 = arith.constant 0 : index
    %c0_2 = arith.constant 0 : index
    %1 = vector.load %arg2[%c0_1, %c0_2] : memref<32x128xf32, #tpu.memory_space<vmem>>, vector<32x128xf32>
    %cst = arith.constant dense<0.000000e+00> : vector<8x128xf32>
    %2 = tpu.matmul %0, %1, %cst {dimension_numbers = #tpu.dot_dimension_numbers<[1], [0], [0], [1], [0, 0, 1, 1], [], []>} : vector<8x32xf32>, vector<32x128xf32>, vector<8x128xf32> -> vector<8x128xf32>
    %c0_3 = arith.constant 0 : index
    %c0_4 = arith.constant 0 : index
    %3 = vector.load %arg3[%c0_3, %c0_4] : memref<1x128xf32, #tpu.memory_space<vmem>>, vector<1x128xf32>
    %4 = vector.broadcast %3 : vector<1x128xf32> to vector<8x128xf32>
    %5 = arith.addf %2, %4 : vector<8x128xf32>
    %c0_5 = arith.constant 0 : index
    %c0_6 = arith.constant 0 : index
    %6 = vector.load %arg4[%c0_5, %c0_6] : memref<8x128xf32, #tpu.memory_space<vmem>>, vector<8x128xf32>
    tpu.vector_store %arg4[%c0_5, %c0_6], %5 {strides = array<i32>} : memref<8x128xf32, #tpu.memory_space<vmem>>, vector<8x128xf32>,
    return
  }
  func.func @transform_0(%arg0: i32) -> (i32, i32) {
    %c0_i32 = arith.constant 0 : i32
    %c0_i32_0 = arith.constant 0 : i32
    return %arg0, %c0_i32 : i32, i32
  }
  func.func @transform_1(%arg0: i32) -> (i32, i32) {
    %c0_i32 = arith.constant 0 : i32
    %c0_i32_0 = arith.constant 0 : i32
    %c0_i32_1 = arith.constant 0 : i32
    return %c0_i32, %c0_i32_0 : i32, i32
  }
  func.func @transform_2(%arg0: i32) -> (i32, i32) {
    %c0_i32 = arith.constant 0 : i32
    %c0_i32_0 = arith.constant 0 : i32
    %c0_i32_1 = arith.constant 0 : i32
    return %c0_i32, %c0_i32_0 : i32, i32
  }
  func.func @transform_3(%arg0: i32) -> (i32, i32) {
    %c0_i32 = arith.constant 0 : i32
    %c0_i32_0 = arith.constant 0 : i32
    return %arg0, %c0_i32 : i32, i32
  }
}

module attributes {stable_mosaic.version = 11 : i64} {
  func.func @_edge_inner_product_kernel(%arg0: i32, %arg1: memref<2x128xi32, #tpu.memory_space<vmem>>, %arg2: memref<32x8xf32, #tpu.memory_space<vmem>>, %arg3: memref<1x128xf32, #tpu.memory_space<vmem>>) attributes {dimension_semantics = [#tpu.dimension_semantics<parallel>], iteration_bounds = array<i64: 1>, scalar_prefetch = 0 : i64, scratch_operands = 0 : i64, tpu.core_type = #tpu.core_type<tc>, window_params = [{transform_indices = @transform_0, window_bounds = array<i64: 2, 128>}, {pipeline_mode = #tpu.pipeline_mode<synchronous>, transform_indices = @transform_1, window_bounds = array<i64: 32, 8>}, {transform_indices = @transform_2, window_bounds = array<i64: 1, 128>}]} {
    %c0 = arith.constant 0 : index
    %c0_0 = arith.constant 0 : index
    %0 = vector.load %arg2[%c0, %c0_0] : memref<32x8xf32, #tpu.memory_space<vmem>>, vector<32x8xf32>
    %c0_1 = arith.constant 0 : index
    %c0_2 = arith.constant 0 : index
    %1 = vector.load %arg1[%c0_1, %c0_2] : memref<2x128xi32, #tpu.memory_space<vmem>>, vector<2x128xi32>
    %2 = tpu.iota {dimensions = array<i32: 0>} : vector<8x128xi32>
    %3 = vector.extract_strided_slice %1 {offsets = [0, 0], sizes = [1, 128], strides = [1, 1]} : vector<2x128xi32> to vector<1x128xi32>
    %4 = vector.broadcast %3 : vector<1x128xi32> to vector<8x128xi32>
    %5 = arith.cmpi eq, %2, %4 : vector<8x128xi32>
    %cst = arith.constant 1.000000e+00 : f32
    %cst_3 = arith.constant 0.000000e+00 : f32
    %6 = vector.broadcast %cst : f32 to vector<8x128xf32>
    %7 = vector.broadcast %cst_3 : f32 to vector<8x128xf32>
    %8 = arith.select %5, %6, %7 : vector<8x128xi1>, vector<8x128xf32>
    %9 = vector.extract_strided_slice %1 {offsets = [1, 0], sizes = [1, 128], strides = [1, 1]} : vector<2x128xi32> to vector<1x128xi32>
    %10 = vector.broadcast %9 : vector<1x128xi32> to vector<8x128xi32>
    %11 = arith.cmpi eq, %2, %10 : vector<8x128xi32>
    %cst_4 = arith.constant 1.000000e+00 : f32
    %cst_5 = arith.constant 0.000000e+00 : f32
    %12 = vector.broadcast %cst_4 : f32 to vector<8x128xf32>
    %13 = vector.broadcast %cst_5 : f32 to vector<8x128xf32>
    %14 = arith.select %11, %12, %13 : vector<8x128xi1>, vector<8x128xf32>
    %cst_6 = arith.constant dense<0.000000e+00> : vector<32x128xf32>
    %15 = tpu.matmul %0, %8, %cst_6 {dimension_numbers = #tpu.dot_dimension_numbers<[1], [0], [0], [1], [0, 0, 1, 1], [], []>} : vector<32x8xf32>, vector<8x128xf32>, vector<32x128xf32> -> vector<32x128xf32>
    %cst_7 = arith.constant dense<0.000000e+00> : vector<32x128xf32>
    %16 = tpu.matmul %0, %14, %cst_7 {dimension_numbers = #tpu.dot_dimension_numbers<[1], [0], [0], [1], [0, 0, 1, 1], [], []>} : vector<32x8xf32>, vector<8x128xf32>, vector<32x128xf32> -> vector<32x128xf32>
    %17 = arith.mulf %15, %16 : vector<32x128xf32>
    %cst_8 = arith.constant dense<0.000000e+00> : vector<128xf32>
    %18 = vector.multi_reduction <add>, %17, %cst_8 [0] : vector<32x128xf32> to vector<128xf32>
    %19 = vector.shape_cast %18 : vector<128xf32> to vector<1x128xf32>
    %20 = arith.negf %19 : vector<1x128xf32>
    %21 = math.exp %20 : vector<1x128xf32>
    %cst_9 = arith.constant 1.000000e+00 : f32
    %22 = vector.broadcast %cst_9 : f32 to vector<1x128xf32>
    %23 = arith.addf %22, %21 : vector<1x128xf32>
    %24 = arith.divf %22, %23 : vector<1x128xf32>
    %c0_10 = arith.constant 0 : index
    %c0_11 = arith.constant 0 : index
    %25 = vector.load %arg3[%c0_10, %c0_11] : memref<1x128xf32, #tpu.memory_space<vmem>>, vector<1x128xf32>
    tpu.vector_store %arg3[%c0_10, %c0_11], %24 {strides = array<i32>} : memref<1x128xf32, #tpu.memory_space<vmem>>, vector<1x128xf32>,
    return
  }
  func.func @transform_0(%arg0: i32) -> (i32, i32) {
    %c0_i32 = arith.constant 0 : i32
    %c0_i32_0 = arith.constant 0 : i32
    return %c0_i32, %arg0 : i32, i32
  }
  func.func @transform_1(%arg0: i32) -> (i32, i32) {
    %c0_i32 = arith.constant 0 : i32
    %c0_i32_0 = arith.constant 0 : i32
    %c0_i32_1 = arith.constant 0 : i32
    return %c0_i32, %c0_i32_0 : i32, i32
  }
  func.func @transform_2(%arg0: i32) -> (i32, i32) {
    %c0_i32 = arith.constant 0 : i32
    %c0_i32_0 = arith.constant 0 : i32
    return %c0_i32, %arg0 : i32, i32
  }
}

</mosaic_0001>

<llo_original>
// kernel: inner_product_decoder_forward.2
$region0: #{inner_product_decoder_forward.2}
  #allocation0 [shape = 'u32[]', space=smem, size = 0x4, offset = 0x4, fixed_abs, tag = 'smem constant byte address 0x4 - core index']
  #allocation1 [shape = 'u32[72,128]{1,0:T(1,128)}', space=vmem, size = 0x9000, scoped, tag = 'internal scratch']
  %s0 = inlined_call_operand.vmem [shape: s32[2,128], index: 0, kind: input, shape index: {}]
  %s1 = inlined_call_operand.vmem [shape: f32[32,8], index: 1, kind: input, shape index: {}]
  %s2 = inlined_call_operand.vmem [shape: f32[1,128], index: 2, kind: output, shape index: {}]
  %s3 = sld [smem:[#allocation0]]
  $region18: #{inner_product_decoder_forward.2} parent=0
    _
  %s5 = ssub.s32 1, %s3
  %s6 = scalar_select 0, %s5, %s3
  // Predicated region
  $region2: #{inner_product_decoder_forward.2} parent=0 // pred_check
    _
  $region3: #{inner_product_decoder_forward.2} parent=0 // pred_check_branch
    %8 = sbr.rel (0) target = $region5
  $region4: #{inner_product_decoder_forward.2} parent=0 // pred_region
    _
  $region5: #{inner_product_decoder_forward.2} parent=0 // pred_fallthru
    _
  // Predicated region
  $region6: #{inner_product_decoder_forward.2} parent=0 // pred_check
    _
  $region7: #{inner_product_decoder_forward.2} parent=0 // pred_check_branch
    %10 = sbr.rel (0) target = $region9
  $region8: #{inner_product_decoder_forward.2} parent=0 // pred_region
    _
  $region9: #{inner_product_decoder_forward.2} parent=0 // pred_fallthru
    _
  %v11 = vld [vmem:[%s1] sm:$0xff]
  %v12 = vld [vmem:[%s1 + $0x8] sm:$0xff]
  %v13 = vld [vmem:[%s1 + $0x10] sm:$0xff]
  %v14 = vld [vmem:[%s1 + $0x18] sm:$0xff]
  %v15 = vld [vmem:[%s0] sm:$0x3]
  %v16 = vlaneseq
  %v17 = vshrl.u32 %v16, 7
  %v18 = vperm.slane %v15, 0
  %vm19 = vcmp.eq.s32.totalorder %v17, %v18
  %v20 = vsel %vm19, 1.0, 0.0
  %v21 = vperm.slane %v15, 1
  %vm22 = vcmp.eq.s32.totalorder %v17, %v21
  %v23 = vsel %vm22, 1.0, 0.0
  %vm24 = vcmask 64512
  %v26 = vsel %vm24, %v11, 0
  %v29 = vsel %vm24, %v12, 0
  %v32 = vsel %vm24, %v13, 0
  %v35 = vsel %vm24, %v14, 0
  %37 = vmatpush.msra.mxu0 0.0
  %38 = vmatpush.msra.mxu0 0.0
  %39 = vmatpush.msra.mxu0 0.0
  %40 = vmatpush.msra.mxu0 0.0
  %41 = vmatpush.msra.mxu0 0.0
  %42 = vmatpush.msra.mxu0 0.0
  %43 = vmatpush.msra.mxu0 0.0
  %44 = vmatpush.msra.mxu0 0.0
  %45 = vmatpush.msra.mxu0 0.0
  %46 = vmatpush.msra.mxu0 0.0
  %47 = vmatpush.msra.mxu0 0.0
  %48 = vmatpush.msra.mxu0 0.0
  %49 = vmatpush.msra.mxu0 0.0
  %50 = vmatpush.msra.mxu0 0.0
  %51 = vmatpush.msra.mxu0 0.0
  %52 = vmatpush.msra.mxu0 %v20
  %53 = vmatmul.f32.gmra.mxu0 %v26
  %v54 = vpop.f32.mrf.mxu0
  %v55 = vadd.f32 0.0, %v54
  %56 = vmatmul.f32.gmra.mxu0 %v29
  %v57 = vpop.f32.mrf.mxu0
  %v58 = vadd.f32 0.0, %v57
  %59 = vmatmul.f32.gmra.mxu0 %v32
  %v60 = vpop.f32.mrf.mxu0
  %v61 = vadd.f32 0.0, %v60
  %62 = vmatmul.f32.gmra.mxu0 %v35
  %v63 = vpop.f32.mrf.mxu0
  %v64 = vadd.f32 0.0, %v63
  %65 = vdwg.mxu0
  %66 = vmatpush.msra.mxu0 0.0
  %67 = vmatpush.msra.mxu0 0.0
  %68 = vmatpush.msra.mxu0 0.0
  %69 = vmatpush.msra.mxu0 0.0
  %70 = vmatpush.msra.mxu0 0.0
  %71 = vmatpush.msra.mxu0 0.0
  %72 = vmatpush.msra.mxu0 0.0
  %73 = vmatpush.msra.mxu0 0.0
  %74 = vmatpush.msra.mxu0 0.0
  %75 = vmatpush.msra.mxu0 0.0
  %76 = vmatpush.msra.mxu0 0.0
  %77 = vmatpush.msra.mxu0 0.0
  %78 = vmatpush.msra.mxu0 0.0
  %79 = vmatpush.msra.mxu0 0.0
  %80 = vmatpush.msra.mxu0 0.0
  %81 = vmatpush.msra.mxu0 %v23
  %82 = vmatmul.f32.gmra.mxu0 %v26
  %v83 = vpop.f32.mrf.mxu0
  %v84 = vadd.f32 0.0, %v83
  %85 = vmatmul.f32.gmra.mxu0 %v29
  %v86 = vpop.f32.mrf.mxu0
  %v87 = vadd.f32 0.0, %v86
  %88 = vmatmul.f32.gmra.mxu0 %v32
  %v89 = vpop.f32.mrf.mxu0
  %v90 = vadd.f32 0.0, %v89
  %91 = vmatmul.f32.gmra.mxu0 %v35
  %v92 = vpop.f32.mrf.mxu0
  %v93 = vadd.f32 0.0, %v92
  %94 = vdwg.mxu0
  %v95 = vmul.f32 %v55, %v84
  %v96 = vmul.f32 %v58, %v87
  %v97 = vmul.f32 %v61, %v90
  %v98 = vmul.f32 %v64, %v93
  %v99 = vadd.f32 %v95, %v96
  %v100 = vadd.f32 %v99, %v97
  %v101 = vadd.f32 %v100, %v98
  %v102 = vrot.slane %v101, 4
  %v103 = vadd.f32 %v101, %v102
  %v104 = vrot.slane %v103, 2
  %v105 = vadd.f32 %v103, %v104
  %v106 = vrot.slane %v105, 1
  %v107 = vadd.f32 %v105, %v106
  %v108 = vxor.u32 %v107, 2147483648
  %v109 = vmul.f32 %v108, 1.442695
  %v110 = vpow.pop %v109
  %v111 = vadd.f32 %v110, 1.0
  %v112 = vrcp.pop %v111
  %v113 = vmul.f32 %v111, %v112
  %v114 = vsub.f32 1.0, %v113
  %v115 = vmul.f32 %v112, %v114
  %v116 = vadd.f32 %v112, %v115
  %vm117 = vweird.f32 %v111
  %vm118 = vweird.f32 %v112
  %vm119 = vmor %vm117, %vm118
  %v120 = vsel %vm119, %v112, %v116
  %v121 = vand.u32 2147483647, %v111
  %vm122 = vcmp.eq.f32.partialorder %v121, 8.507059e+37
  %v123 = vand.u32 %v111, 2147483648
  %v124 = vor.u32 1.1754944e-38, %v123
  %v125 = vsel %vm122, %v124, %v120
  %v126 = vmul.f32 1.0, %v125
  %127 = vst [vmem:[%s2] sm:$0x1] %v126
  // Predicated region
  $region10: #{inner_product_decoder_forward.2} parent=0 // pred_check
    _
  $region11: #{inner_product_decoder_forward.2} parent=0 // pred_check_branch
    %129 = sbr.rel (0) target = $region13
  $region12: #{inner_product_decoder_forward.2} parent=0 // pred_region
    _
  $region13: #{inner_product_decoder_forward.2} parent=0 // pred_fallthru
    _
  // Predicated region
  $region14: #{inner_product_decoder_forward.2} parent=0 // pred_check
    _
  $region15: #{inner_product_decoder_forward.2} parent=0 // pred_check_branch
    %131 = sbr.rel (0) target = $region17
  $region16: #{inner_product_decoder_forward.2} parent=0 // pred_region
    _
  $region17: #{inner_product_decoder_forward.2} parent=0 // pred_fallthru
    _

// kernel: inner_product_decoder_forward.3
$region0: #{inner_product_decoder_forward.3}
  #allocation0 [shape = 'u32[]', space=smem, size = 0x4, offset = 0x4, fixed_abs, tag = 'smem constant byte address 0x4 - core index']
  #allocation1 [shape = 'u32[72,128]{1,0:T(1,128)}', space=vmem, size = 0x9000, scoped, tag = 'internal scratch']
  %s0 = inlined_call_operand.vmem [shape: f32[8,32], index: 0, kind: input, shape index: {}]
  %s1 = inlined_call_operand.vmem [shape: f32[32,128], index: 1, kind: input, shape index: {}]
  %s2 = inlined_call_operand.vmem [shape: f32[1,128], index: 2, kind: input, shape index: {}]
  %s3 = inlined_call_operand.hbm [shape: f32[8,128], index: 3, kind: output, shape index: {}]
  %s4 = sld [smem:[#allocation0]]
  $region22: #{inner_product_decoder_forward.3} parent=0
    _
  %s6 = ssub.s32 1, %s4
  %s7 = scalar_select 0, %s6, %s4
  $region1: #{inner_product_decoder_forward.3} parent=0
    #allocation2 [shape = 'u8[4096]{0}', space=vmem, size = 0x1000, scoped, tag = 'output window, operand 0, single buffered']
    #allocation3 [shape = 's32[1]{0}', space=sflag, size = 0x4, scoped, tag = 'scoped memory for inner_product_decoder_forward.3']
    %8 = vsyncpa [#allocation3], 0
    // Predicated region
    $region2: #{inner_product_decoder_forward.3} parent=1 // pred_check
      _
    $region3: #{inner_product_decoder_forward.3} parent=1 // pred_check_branch
      %10 = sbr.rel (0) target = $region5
    $region4: #{inner_product_decoder_forward.3} parent=1 // pred_region
      _
    $region5: #{inner_product_decoder_forward.3} parent=1 // pred_fallthru
      _
    // Predicated region
    $region6: #{inner_product_decoder_forward.3} parent=1 // pred_check
      _
    $region7: #{inner_product_decoder_forward.3} parent=1 // pred_check_branch
      %12 = sbr.rel (0) target = $region9
    $region8: #{inner_product_decoder_forward.3} parent=1 // pred_region
      _
    $region9: #{inner_product_decoder_forward.3} parent=1 // pred_fallthru
      _
    // Predicated region
    $region10: #{inner_product_decoder_forward.3} parent=1 // pred_check
      _
    $region11: #{inner_product_decoder_forward.3} parent=1 // pred_check_branch
      %14 = sbr.rel (0) target = $region13
    $region12: #{inner_product_decoder_forward.3} parent=1 // pred_region
      _
    $region13: #{inner_product_decoder_forward.3} parent=1 // pred_fallthru
      _
    %v15 = vld [vmem:[%s0] sm:$0xff]
    %v16 = vld [vmem:[%s1] sm:$0xff]
    %v17 = vld [vmem:[%s1 + $0x8] sm:$0xff]
    %v18 = vld [vmem:[%s1 + $0x10] sm:$0xff]
    %v19 = vld [vmem:[%s1 + $0x18] sm:$0xff]
    %v20 = vld [vmem:[%s2] sm:$0x1]
    %v22 = vperm.slane %v20, 0
    %vm24 = vcmask 261120
    %v26 = vsel %vm24, %v15, 0
    %28 = vmatpush.msra.mxu0 0.0
    %29 = vmatpush.msra.mxu0 0.0
    %30 = vmatpush.msra.mxu0 0.0
    %31 = vmatpush.msra.mxu0 0.0
    %32 = vmatpush.msra.mxu0 0.0
    %33 = vmatpush.msra.mxu0 0.0
    %34 = vmatpush.msra.mxu0 0.0
    %35 = vmatpush.msra.mxu0 0.0
    %36 = vmatpush.msra.mxu0 0.0
    %37 = vmatpush.msra.mxu0 0.0
    %38 = vmatpush.msra.mxu0 0.0
    %39 = vmatpush.msra.mxu0 0.0
    %40 = vmatpush.msra.mxu0 %v19
    %41 = vmatpush.msra.mxu0 %v18
    %42 = vmatpush.msra.mxu0 %v17
    %43 = vmatpush.msra.mxu0 %v16
    %44 = vmatmul.f32.gmra.mxu0 %v26
    %v45 = vpop.f32.mrf.mxu0
    %v46 = vadd.f32 %v22, %v45
    %47 = vdwg.mxu0
    %48 = vst [vmem:[#allocation2] sm:$0xff] %v46
    // Predicated region
    $region14: #{inner_product_decoder_forward.3} parent=1 // pred_check
      _
    $region15: #{inner_product_decoder_forward.3} parent=1 // pred_check_branch
      %50 = sbr.rel (0) target = $region17
    $region16: #{inner_product_decoder_forward.3} parent=1 // pred_region
      %52 = vsyncadd [#allocation3], 0
      %s54 = sshll.u32 [#allocation2], 4
      %s55 = int_to_ptr.vmem [resolvable:$true] %s54
      %s56 = sshll.u32 %s3, 4
      %s57 = int_to_ptr.hbm [resolvable:$true] %s56
      %59 = dma.vmem_to_hbm [thread:$0]  %s55, 128, %s57, [#allocation3]
    $region17: #{inner_product_decoder_forward.3} parent=1 // pred_fallthru
      _
    // Predicated region
    $region18: #{inner_product_decoder_forward.3} parent=1 // pred_check
      _
    $region19: #{inner_product_decoder_forward.3} parent=1 // pred_check_branch
      %61 = sbr.rel (0) target = $region21
    $region20: #{inner_product_decoder_forward.3} parent=1 // pred_region
      %63 = dma.done [#allocation3], 128
    $region21: #{inner_product_decoder_forward.3} parent=1 // pred_fallthru
      _
    %64 = vsyncpa [#allocation3], 1

</llo_original>
